<compile_context>
chip_gen: v7x
topology: tpu7x:2x2x1
jax: 0.10.0
libtpu: 0.0.40
codegen_flags: <defaults>
</compile_context>

<pallas_src>
import functools

import jax
import jax.numpy as jnp
from jax import lax
from jax.experimental import pallas as pl
from jax.experimental.pallas import tpu as pltpu

MU = 0.7
GAMMA = 1.0
TOP_K = 2
LN_EPS = 1e-5  # PyTorch nn.LayerNorm default


def _round_up(a, b):
    return (a + b - 1) // b * b


def _moe_kernel(x_ref, mom_ref, wg_ref, bg_ref, w1c_ref, b1c_ref, w2c_ref,
                b2_ref, sel_ref, ln_w_ref, ln_b_ref, out_ref, new_mom_ref):
    x = x_ref[...].astype(jnp.float32)        # [tm, D]
    mom = mom_ref[...].astype(jnp.float32)    # [tm, D]

    # ------------------ gate: f32 logits -> top-k softmax --------------------
    # Gate kept in f32 (tiny matmul) so expert selection is bit-robust.
    logits = jnp.dot(x, wg_ref[...], preferred_element_type=jnp.float32)
    logits = logits + bg_ref[...]             # [tm, E]
    num_experts = logits.shape[-1]

    neg_inf = jnp.float32(-1e30)
    iota_e = lax.broadcasted_iota(jnp.int32, logits.shape, 1)

    onehots = []
    vals = []
    masked = logits
    for _ in range(TOP_K):
        vk = jnp.max(masked, axis=-1, keepdims=True)          # [tm, 1]
        is_max = masked == vk
        # first occurrence wins on ties (same as torch.topk)
        first_idx = jnp.min(jnp.where(is_max, iota_e, num_experts),
                            axis=-1, keepdims=True)
        oh = iota_e == first_idx                               # [tm, E]
        onehots.append(oh)
        vals.append(vk)
        masked = jnp.where(oh, neg_inf, masked)

    m1 = vals[0]
    exps = [jnp.exp(v - m1) for v in vals]                     # TOP_K exps, [tm,1]
    denom = exps[0]
    for e in exps[1:]:
        denom = denom + e
    inv_denom = pl.reciprocal(denom, approx=True)              # EUP slot
    gates = jnp.zeros_like(logits)
    for oh, ex in zip(onehots, exps):
        gates = gates + oh.astype(jnp.float32) * (ex * inv_denom)  # [tm, E]

    # ------------------ experts: two wide fused matmuls ----------------------
    xm = x.astype(w1c_ref.dtype)
    hidden = jnp.dot(xm, w1c_ref[...], preferred_element_type=jnp.float32)
    hidden = jnp.maximum(hidden + b1c_ref[...], 0.0)           # [tm, E*H]
    # TODO(synk): dropout omitted (eval-mode identity).

    # gate scaling: replicate each gate across its expert's H hidden columns.
    gates_rep = jnp.dot(gates, sel_ref[...],
                        preferred_element_type=jnp.float32)    # [tm, E*H]
    hidden_scaled = (hidden * gates_rep).astype(w2c_ref.dtype)

    expert_out = jnp.dot(hidden_scaled, w2c_ref[...],
                         preferred_element_type=jnp.float32)   # [tm, D]
    expert_out = expert_out + jnp.dot(gates, b2_ref[...],
                                      preferred_element_type=jnp.float32)

    # ------------------ momentum residual + LayerNorm ------------------------
    new_mom = MU * mom - expert_out
    out = x + GAMMA * new_mom

    mean = jnp.mean(out, axis=-1, keepdims=True)
    var = jnp.mean(jnp.square(out - mean), axis=-1, keepdims=True)
    normed = (out - mean) * lax.rsqrt(var + LN_EPS)
    normed = normed * ln_w_ref[...] + ln_b_ref[...]

    out_ref[...] = normed.astype(out_ref.dtype)
    new_mom_ref[...] = new_mom.astype(new_mom_ref.dtype)


@functools.partial(jax.jit, static_argnames=("tm", "matmul_dtype"))
def momentum_smoe_forward(x, momentum, params, *, tm=256,
                          matmul_dtype=jnp.bfloat16):
    """x, momentum: [..., D] float arrays. Returns (output, new_momentum)."""
    if momentum is None:
        momentum = jnp.zeros_like(x)

    orig_shape = x.shape
    D = orig_shape[-1]
    x2 = x.reshape(-1, D)
    mom2 = momentum.reshape(-1, D)
    T = x2.shape[0]

    E = params["wg"].shape[1]
    H = params["w1"].shape[2]
    EH = E * H

    # Fused / concatenated weight layouts (bf16 operands, f32 accumulation).
    w1c = jnp.transpose(params["w1"], (1, 0, 2)).reshape(D, EH).astype(matmul_dtype)
    b1c = params["b1"].reshape(1, EH).astype(jnp.float32)
    w2c = params["w2"].reshape(EH, D).astype(matmul_dtype)
    b2 = params["b2"].astype(jnp.float32)                       # [E, D]
    sel = jnp.repeat(jnp.eye(E, dtype=jnp.float32), H, axis=1)  # [E, E*H]
    wg = params["wg"].astype(jnp.float32)
    bg = params["bg"].astype(jnp.float32)
    ln_w = params["ln_w"].astype(jnp.float32)
    ln_b = params["ln_b"].astype(jnp.float32)

    # Token tile: as large as possible (>=256 by default), clamped/padded for
    # small inputs. Keeps grid >=2 steps automatically at production sizes
    # (v7x dual-TC); a single step is fine for tiny demo shapes.
    assert tm % 8 == 0
    tm_eff = min(tm, _round_up(T, 8))
    Tp = _round_up(T, tm_eff)
    pad = Tp - T
    if pad:
        x2 = jnp.pad(x2, ((0, pad), (0, 0)))
        mom2 = jnp.pad(mom2, ((0, pad), (0, 0)))

    # Explicit VMEM budget (re-derived from shapes; capped for v7x's 64 MiB).
    mm_bytes = jnp.dtype(matmul_dtype).itemsize
    tok_bytes = 4 * 2 * tm_eff * D * 4                       # 4 token arrays x 2 bufs
    w_bytes = 2 * (D * EH * mm_bytes + EH * D * mm_bytes
                   + EH * 4 + E * D * 4 + D * E * 4 + E * 4
                   + 2 * D * 4 + E * EH * 4)
    interm_bytes = 4 * tm_eff * EH * 4                       # hidden intermediates
    vmem_est = tok_bytes + w_bytes + interm_bytes
    vmem_limit = int(min(max(2 * vmem_est, 32 * 1024 * 1024), 64 * 1024 * 1024))

    grid = (Tp // tm_eff,)
    tok_spec = pl.BlockSpec((tm_eff, D), lambda i: (i, 0))
    full = lambda shape: pl.BlockSpec(shape, lambda i: (0, 0))
    # NOTE: constant-index weight specs could be single-buffered
    # (pipeline_mode=pl.Buffered(1)); weights here are tiny so left default.

    out, new_mom = pl.pallas_call(
        _moe_kernel,
        out_shape=(jax.ShapeDtypeStruct((Tp, D), x.dtype),
                   jax.ShapeDtypeStruct((Tp, D), x.dtype)),
        grid=grid,
        in_specs=[
            tok_spec,            # x
            tok_spec,            # momentum
            full((D, E)),        # wg
            full((1, E)),        # bg
            full((D, EH)),       # w1 concatenated
            full((1, EH)),       # b1 concatenated
            full((EH, D)),       # w2 concatenated
            full((E, D)),        # b2
            full((E, EH)),       # gate -> hidden-column selection matrix
            full((1, D)),        # ln_w
            full((1, D)),        # ln_b
        ],
        out_specs=(tok_spec, tok_spec),
        compiler_params=pltpu.CompilerParams(
            dimension_semantics=("parallel",),
            vmem_limit_bytes=vmem_limit),
    )(x2, mom2, wg, bg, w1c, b1c, w2c, b2, sel, ln_w, ln_b)

    if pad:
        out = out[:T]
        new_mom = new_mom[:T]
    return out.reshape(orig_shape), new_mom.reshape(orig_shape)


def _reference(x, momentum, params):
    """Pure-JAX f32 reference mirroring the PyTorch forward."""
    logits = x @ params["wg"] + params["bg"][0]
    topv, topi = lax.top_k(logits, TOP_K)
    soft = jax.nn.softmax(topv, axis=-1)
    gates = jnp.zeros_like(logits).at[
        jnp.arange(x.shape[0])[:, None], topi].set(soft)
    expert_outputs = jnp.zeros_like(x)
    for e in range(params["w1"].shape[0]):
        h = jnp.maximum(x @ params["w1"][e] + params["b1"][e], 0.0)
        o = h @ params["w2"][e] + params["b2"][e]
        expert_outputs = expert_outputs + gates[:, e:e + 1] * o
    new_mom = -expert_outputs + MU * momentum
    out = x + GAMMA * new_mom
    mean = out.mean(-1, keepdims=True)
    var = ((out - mean) ** 2).mean(-1, keepdims=True)
    out = (out - mean) / jnp.sqrt(var + LN_EPS)
    out = out * params["ln_w"][0] + params["ln_b"][0]
    return out, new_mom


def init_params(key, input_dim, hidden_dim, output_dim, num_experts):
    assert input_dim == output_dim
    ks = jax.random.split(key, 6)
    scale1 = 1.0 / jnp.sqrt(input_dim)
    scale2 = 1.0 / jnp.sqrt(hidden_dim)
    return {
        "wg": jax.random.normal(ks[0], (input_dim, num_experts), jnp.float32) * scale1,
        "bg": jnp.zeros((1, num_experts), jnp.float32),
        "w1": jax.random.normal(ks[1], (num_experts, input_dim, hidden_dim), jnp.float32) * scale1,
        "b1": jax.random.normal(ks[2], (num_experts, hidden_dim), jnp.float32) * 0.01,
        "w2": jax.random.normal(ks[3], (num_experts, hidden_dim, output_dim), jnp.float32) * scale2,
        "b2": jax.random.normal(ks[4], (num_experts, output_dim), jnp.float32) * 0.01,
        "ln_w": jnp.ones((1, output_dim), jnp.float32),
        "ln_b": jnp.zeros((1, output_dim), jnp.float32),
    }


if __name__ == "__main__":
    batch, seq, input_dim, hidden_dim, num_experts = 2, 8, 32, 64, 4
    output_dim = input_dim

    key = jax.random.PRNGKey(0)
    k_x, k_p = jax.random.split(key)
    x = jax.random.normal(k_x, (batch, seq, input_dim), jnp.float32)
    params = init_params(k_p, input_dim, hidden_dim, output_dim, num_experts)

    # momentum=None -> zeros_like(x), as in the PyTorch forward.
    out, new_mom = momentum_smoe_forward(x, None, params)
    out = jax.block_until_ready(out)
    new_mom = jax.block_until_ready(new_mom)

    x_tok = x.reshape(-1, input_dim)
    ref_out, ref_mom = _reference(x_tok, jnp.zeros_like(x_tok), params)

    assert out.shape == x.shape and new_mom.shape == x.shape
    # bf16 matmul operands with f32 accumulation -> ~0.5% relative error budget.
    assert jnp.allclose(out.reshape(-1, input_dim), ref_out,
                        rtol=3e-2, atol=3e-2), "output mismatch"
    assert jnp.allclose(new_mom.reshape(-1, input_dim), ref_mom,
                        rtol=3e-2, atol=3e-2), "momentum mismatch"

    print("KERNEL_OK")
</pallas_src>

<mosaic_0001>
module attributes {stable_mosaic.version = 11 : i64} {
  func.func @_moe_kernel(%arg0: i32, %arg1: memref<16x32xf32, #tpu.memory_space<vmem>>, %arg2: memref<16x32xf32, #tpu.memory_space<vmem>>, %arg3: memref<32x4xf32, #tpu.memory_space<vmem>>, %arg4: memref<1x4xf32, #tpu.memory_space<vmem>>, %arg5: memref<32x256xbf16, #tpu.memory_space<vmem>>, %arg6: memref<1x256xf32, #tpu.memory_space<vmem>>, %arg7: memref<256x32xbf16, #tpu.memory_space<vmem>>, %arg8: memref<4x32xf32, #tpu.memory_space<vmem>>, %arg9: memref<4x256xf32, #tpu.memory_space<vmem>>, %arg10: memref<1x32xf32, #tpu.memory_space<vmem>>, %arg11: memref<1x32xf32, #tpu.memory_space<vmem>>, %arg12: memref<16x32xf32, #tpu.memory_space<vmem>>, %arg13: memref<16x32xf32, #tpu.memory_space<vmem>>) attributes {dimension_semantics = [#tpu.dimension_semantics<parallel>], iteration_bounds = array<i64: 1>, scalar_prefetch = 0 : i64, scratch_operands = 0 : i64, tpu.core_type = #tpu.core_type<tc>, window_params = [{transform_indices = @transform_0, window_bounds = array<i64: 16, 32>}, {transform_indices = @transform_1, window_bounds = array<i64: 16, 32>}, {pipeline_mode = #tpu.pipeline_mode<synchronous>, transform_indices = @transform_2, window_bounds = array<i64: 32, 4>}, {pipeline_mode = #tpu.pipeline_mode<synchronous>, transform_indices = @transform_3, window_bounds = array<i64: 1, 4>}, {pipeline_mode = #tpu.pipeline_mode<synchronous>, transform_indices = @transform_4, window_bounds = array<i64: 32, 256>}, {pipeline_mode = #tpu.pipeline_mode<synchronous>, transform_indices = @transform_5, window_bounds = array<i64: 1, 256>}, {pipeline_mode = #tpu.pipeline_mode<synchronous>, transform_indices = @transform_6, window_bounds = array<i64: 256, 32>}, {pipeline_mode = #tpu.pipeline_mode<synchronous>, transform_indices = @transform_7, window_bounds = array<i64: 4, 32>}, {pipeline_mode = #tpu.pipeline_mode<synchronous>, transform_indices = @transform_8, window_bounds = array<i64: 4, 256>}, {pipeline_mode = #tpu.pipeline_mode<synchronous>, transform_indices = @transform_9, window_bounds = array<i64: 1, 32>}, {pipeline_mode = #tpu.pipeline_mode<synchronous>, transform_indices = @transform_10, window_bounds = array<i64: 1, 32>}, {transform_indices = @transform_11, window_bounds = array<i64: 16, 32>}, {transform_indices = @transform_12, window_bounds = array<i64: 16, 32>}]} {
    %c0 = arith.constant 0 : index
    %c0_0 = arith.constant 0 : index
    %0 = vector.load %arg1[%c0, %c0_0] : memref<16x32xf32, #tpu.memory_space<vmem>>, vector<16x32xf32>
    %c0_1 = arith.constant 0 : index
    %c0_2 = arith.constant 0 : index
    %1 = vector.load %arg2[%c0_1, %c0_2] : memref<16x32xf32, #tpu.memory_space<vmem>>, vector<16x32xf32>
    %c0_3 = arith.constant 0 : index
    %c0_4 = arith.constant 0 : index
    %2 = vector.load %arg3[%c0_3, %c0_4] : memref<32x4xf32, #tpu.memory_space<vmem>>, vector<32x4xf32>
    %cst = arith.constant dense<0.000000e+00> : vector<16x4xf32>
    %3 = tpu.matmul %0, %2, %cst {dimension_numbers = #tpu.dot_dimension_numbers<[1], [0], [0], [1], [0, 0, 1, 1], [], []>} : vector<16x32xf32>, vector<32x4xf32>, vector<16x4xf32> -> vector<16x4xf32>
    %c0_5 = arith.constant 0 : index
    %c0_6 = arith.constant 0 : index
    %4 = vector.load %arg4[%c0_5, %c0_6] : memref<1x4xf32, #tpu.memory_space<vmem>>, vector<1x4xf32>
    %5 = vector.broadcast %4 : vector<1x4xf32> to vector<16x4xf32>
    %6 = arith.addf %3, %5 : vector<16x4xf32>
    %7 = tpu.iota {dimensions = array<i32: 1>} : vector<16x4xi32>
    %cst_7 = arith.constant dense<0xFF800000> : vector<16xf32>
    %8 = vector.multi_reduction <maximumf>, %6, %cst_7 [1] : vector<16x4xf32> to vector<16xf32>
    %9 = vector.shape_cast %8 : vector<16xf32> to vector<16x1xf32>
    %10 = vector.broadcast %9 : vector<16x1xf32> to vector<16x4xf32>
    %11 = arith.cmpf oeq, %6, %10 : vector<16x4xf32>
    %c4_i32 = arith.constant 4 : i32
    %12 = vector.broadcast %c4_i32 : i32 to vector<16x4xi32>
    %13 = arith.select %11, %7, %12 : vector<16x4xi1>, vector<16x4xi32>
    %cst_8 = arith.constant dense<2147483647> : vector<16xi32>
    %14 = vector.multi_reduction <minsi>, %13, %cst_8 [1] : vector<16x4xi32> to vector<16xi32>
    %15 = vector.shape_cast %14 : vector<16xi32> to vector<16x1xi32>
    %16 = vector.broadcast %15 : vector<16x1xi32> to vector<16x4xi32>
    %17 = arith.cmpi eq, %7, %16 : vector<16x4xi32>
    %cst_9 = arith.constant -1.000000e+30 : f32
    %18 = vector.broadcast %cst_9 : f32 to vector<16x4xf32>
    %19 = arith.select %17, %18, %6 : vector<16x4xi1>, vector<16x4xf32>
    %cst_10 = arith.constant dense<0xFF800000> : vector<16xf32>
    %20 = vector.multi_reduction <maximumf>, %19, %cst_10 [1] : vector<16x4xf32> to vector<16xf32>
    %21 = vector.shape_cast %20 : vector<16xf32> to vector<16x1xf32>
    %22 = vector.broadcast %21 : vector<16x1xf32> to vector<16x4xf32>
    %23 = arith.cmpf oeq, %19, %22 : vector<16x4xf32>
    %c4_i32_11 = arith.constant 4 : i32
    %24 = vector.broadcast %c4_i32_11 : i32 to vector<16x4xi32>
    %25 = arith.select %23, %7, %24 : vector<16x4xi1>, vector<16x4xi32>
    %cst_12 = arith.constant dense<2147483647> : vector<16xi32>
    %26 = vector.multi_reduction <minsi>, %25, %cst_12 [1] : vector<16x4xi32> to vector<16xi32>
    %27 = vector.shape_cast %26 : vector<16xi32> to vector<16x1xi32>
    %28 = vector.broadcast %27 : vector<16x1xi32> to vector<16x4xi32>
    %29 = arith.cmpi eq, %7, %28 : vector<16x4xi32>
    %30 = arith.subf %9, %9 : vector<16x1xf32>
    %31 = math.exp %30 : vector<16x1xf32>
    %32 = arith.subf %21, %9 : vector<16x1xf32>
    %33 = math.exp %32 : vector<16x1xf32>
    %34 = arith.addf %31, %33 : vector<16x1xf32>
    %35 = tpu.reciprocal %34 {approx = true} : vector<16x1xf32> -> vector<16x1xf32>
    %cst_13 = arith.constant 0.000000e+00 : f32
    %36 = vector.broadcast %cst_13 : f32 to vector<16x4xf32>
    %37 = arith.extui %17 : vector<16x4xi1> to vector<16x4xi32>
    %38 = arith.sitofp %37 : vector<16x4xi32> to vector<16x4xf32>
    %39 = arith.mulf %31, %35 : vector<16x1xf32>
    %40 = vector.broadcast %39 : vector<16x1xf32> to vector<16x4xf32>
    %41 = arith.mulf %38, %40 : vector<16x4xf32>
    %42 = arith.addf %36, %41 : vector<16x4xf32>
    %43 = arith.extui %29 : vector<16x4xi1> to vector<16x4xi32>
    %44 = arith.sitofp %43 : vector<16x4xi32> to vector<16x4xf32>
    %45 = arith.mulf %33, %35 : vector<16x1xf32>
    %46 = vector.broadcast %45 : vector<16x1xf32> to vector<16x4xf32>
    %47 = arith.mulf %44, %46 : vector<16x4xf32>
    %48 = arith.addf %42, %47 : vector<16x4xf32>
    %49 = arith.truncf %0 : vector<16x32xf32> to vector<16x32xbf16>
    %c0_14 = arith.constant 0 : index
    %c0_15 = arith.constant 0 : index
    %50 = vector.load %arg5[%c0_14, %c0_15] : memref<32x256xbf16, #tpu.memory_space<vmem>>, vector<32x256xbf16>
    %cst_16 = arith.constant dense<0.000000e+00> : vector<16x256xf32>
    %51 = tpu.matmul %49, %50, %cst_16 {dimension_numbers = #tpu.dot_dimension_numbers<[1], [0], [0], [1], [0, 0, 1, 1], [], []>} : vector<16x32xbf16>, vector<32x256xbf16>, vector<16x256xf32> -> vector<16x256xf32>
    %c0_17 = arith.constant 0 : index
    %c0_18 = arith.constant 0 : index
    %52 = vector.load %arg6[%c0_17, %c0_18] : memref<1x256xf32, #tpu.memory_space<vmem>>, vector<1x256xf32>
    %53 = vector.broadcast %52 : vector<1x256xf32> to vector<16x256xf32>
    %54 = arith.addf %51, %53 : vector<16x256xf32>
    %cst_19 = arith.constant 0.000000e+00 : f32
    %55 = vector.broadcast %cst_19 : f32 to vector<16x256xf32>
    %56 = arith.maximumf %54, %55 : vector<16x256xf32>
    %c0_20 = arith.constant 0 : index
    %c0_21 = arith.constant 0 : index
    %57 = vector.load %arg9[%c0_20, %c0_21] : memref<4x256xf32, #tpu.memory_space<vmem>>, vector<4x256xf32>
    %cst_22 = arith.constant dense<0.000000e+00> : vector<16x256xf32>
    %58 = tpu.matmul %48, %57, %cst_22 {dimension_numbers = #tpu.dot_dimension_numbers<[1], [0], [0], [1], [0, 0, 1, 1], [], []>} : vector<16x4xf32>, vector<4x256xf32>, vector<16x256xf32> -> vector<16x256xf32>
    %59 = arith.mulf %56, %58 : vector<16x256xf32>
    %60 = arith.truncf %59 : vector<16x256xf32> to vector<16x256xbf16>
    %c0_23 = arith.constant 0 : index
    %c0_24 = arith.constant 0 : index
    %61 = vector.load %arg7[%c0_23, %c0_24] : memref<256x32xbf16, #tpu.memory_space<vmem>>, vector<256x32xbf16>
    %cst_25 = arith.constant dense<0.000000e+00> : vector<16x32xf32>
    %62 = tpu.matmul %60, %61, %cst_25 {dimension_numbers = #tpu.dot_dimension_numbers<[1], [0], [0], [1], [0, 0, 1, 1], [], []>} : vector<16x256xbf16>, vector<256x32xbf16>, vector<16x32xf32> -> vector<16x32xf32>
    %c0_26 = arith.constant 0 : index
    %c0_27 = arith.constant 0 : index
    %63 = vector.load %arg8[%c0_26, %c0_27] : memref<4x32xf32, #tpu.memory_space<vmem>>, vector<4x32xf32>
    %cst_28 = arith.constant dense<0.000000e+00> : vector<16x32xf32>
    %64 = tpu.matmul %48, %63, %cst_28 {dimension_numbers = #tpu.dot_dimension_numbers<[1], [0], [0], [1], [0, 0, 1, 1], [], []>} : vector<16x4xf32>, vector<4x32xf32>, vector<16x32xf32> -> vector<16x32xf32>
    %65 = arith.addf %62, %64 : vector<16x32xf32>
    %cst_29 = arith.constant 0.699999988 : f32
    %66 = vector.broadcast %cst_29 : f32 to vector<16x32xf32>
    %67 = arith.mulf %66, %1 : vector<16x32xf32>
    %68 = arith.subf %67, %65 : vector<16x32xf32>
    %cst_30 = arith.constant 1.000000e+00 : f32
    %69 = vector.broadcast %cst_30 : f32 to vector<16x32xf32>
    %70 = arith.mulf %69, %68 : vector<16x32xf32>
    %71 = arith.addf %0, %70 : vector<16x32xf32>
    %cst_31 = arith.constant dense<0.000000e+00> : vector<16xf32>
    %72 = vector.multi_reduction <add>, %71, %cst_31 [1] : vector<16x32xf32> to vector<16xf32>
    %73 = vector.shape_cast %72 : vector<16xf32> to vector<16x1xf32>
    %cst_32 = arith.constant 3.200000e+01 : f32
    %74 = vector.broadcast %cst_32 : f32 to vector<16x1xf32>
    %75 = arith.divf %73, %74 : vector<16x1xf32>
    %76 = vector.broadcast %75 : vector<16x1xf32> to vector<16x32xf32>
    %77 = arith.subf %71, %76 : vector<16x32xf32>
    %78 = arith.mulf %77, %77 : vector<16x32xf32>
    %cst_33 = arith.constant dense<0.000000e+00> : vector<16xf32>
    %79 = vector.multi_reduction <add>, %78, %cst_33 [1] : vector<16x32xf32> to vector<16xf32>
    %80 = vector.shape_cast %79 : vector<16xf32> to vector<16x1xf32>
    %cst_34 = arith.constant 3.200000e+01 : f32
    %81 = vector.broadcast %cst_34 : f32 to vector<16x1xf32>
    %82 = arith.divf %80, %81 : vector<16x1xf32>
    %83 = vector.broadcast %75 : vector<16x1xf32> to vector<16x32xf32>
    %84 = arith.subf %71, %83 : vector<16x32xf32>
    %cst_35 = arith.constant 9.99999974E-6 : f32
    %85 = vector.broadcast %cst_35 : f32 to vector<16x1xf32>
    %86 = arith.addf %82, %85 : vector<16x1xf32>
    %87 = math.rsqrt %86 : vector<16x1xf32>
    %88 = vector.broadcast %87 : vector<16x1xf32> to vector<16x32xf32>
    %89 = arith.mulf %84, %88 : vector<16x32xf32>
    %c0_36 = arith.constant 0 : index
    %c0_37 = arith.constant 0 : index
    %90 = vector.load %arg10[%c0_36, %c0_37] : memref<1x32xf32, #tpu.memory_space<vmem>>, vector<1x32xf32>
    %91 = vector.broadcast %90 : vector<1x32xf32> to vector<16x32xf32>
    %92 = arith.mulf %89, %91 : vector<16x32xf32>
    %c0_38 = arith.constant 0 : index
    %c0_39 = arith.constant 0 : index
    %93 = vector.load %arg11[%c0_38, %c0_39] : memref<1x32xf32, #tpu.memory_space<vmem>>, vector<1x32xf32>
    %94 = vector.broadcast %93 : vector<1x32xf32> to vector<16x32xf32>
    %95 = arith.addf %92, %94 : vector<16x32xf32>
    %c0_40 = arith.constant 0 : index
    %c0_41 = arith.constant 0 : index
    %96 = vector.load %arg12[%c0_40, %c0_41] : memref<16x32xf32, #tpu.memory_space<vmem>>, vector<16x32xf32>
    tpu.vector_store %arg12[%c0_40, %c0_41], %95 {strides = array<i32>} : memref<16x32xf32, #tpu.memory_space<vmem>>, vector<16x32xf32>,
    %c0_42 = arith.constant 0 : index
    %c0_43 = arith.constant 0 : index
    %97 = vector.load %arg13[%c0_42, %c0_43] : memref<16x32xf32, #tpu.memory_space<vmem>>, vector<16x32xf32>
    tpu.vector_store %arg13[%c0_42, %c0_43], %68 {strides = array<i32>} : memref<16x32xf32, #tpu.memory_space<vmem>>, vector<16x32xf32>,
    return
  }
  func.func @transform_0(%arg0: i32) -> (i32, i32) {
    %c0_i32 = arith.constant 0 : i32
    %c0_i32_0 = arith.constant 0 : i32
    return %arg0, %c0_i32 : i32, i32
  }
  func.func @transform_1(%arg0: i32) -> (i32, i32) {
    %c0_i32 = arith.constant 0 : i32
    %c0_i32_0 = arith.constant 0 : i32
    return %arg0, %c0_i32 : i32, i32
  }
  func.func @transform_2(%arg0: i32) -> (i32, i32) {
    %c0_i32 = arith.constant 0 : i32
    %c0_i32_0 = arith.constant 0 : i32
    %c0_i32_1 = arith.constant 0 : i32
    return %c0_i32, %c0_i32_0 : i32, i32
  }
  func.func @transform_3(%arg0: i32) -> (i32, i32) {
    %c0_i32 = arith.constant 0 : i32
    %c0_i32_0 = arith.constant 0 : i32
    %c0_i32_1 = arith.constant 0 : i32
    return %c0_i32, %c0_i32_0 : i32, i32
  }
  func.func @transform_4(%arg0: i32) -> (i32, i32) {
    %c0_i32 = arith.constant 0 : i32
    %c0_i32_0 = arith.constant 0 : i32
    %c0_i32_1 = arith.constant 0 : i32
    return %c0_i32, %c0_i32_0 : i32, i32
  }
  func.func @transform_5(%arg0: i32) -> (i32, i32) {
    %c0_i32 = arith.constant 0 : i32
    %c0_i32_0 = arith.constant 0 : i32
    %c0_i32_1 = arith.constant 0 : i32
    return %c0_i32, %c0_i32_0 : i32, i32
  }
  func.func @transform_6(%arg0: i32) -> (i32, i32) {
    %c0_i32 = arith.constant 0 : i32
    %c0_i32_0 = arith.constant 0 : i32
    %c0_i32_1 = arith.constant 0 : i32
    return %c0_i32, %c0_i32_0 : i32, i32
  }
  func.func @transform_7(%arg0: i32) -> (i32, i32) {
    %c0_i32 = arith.constant 0 : i32
    %c0_i32_0 = arith.constant 0 : i32
    %c0_i32_1 = arith.constant 0 : i32
    return %c0_i32, %c0_i32_0 : i32, i32
  }
  func.func @transform_8(%arg0: i32) -> (i32, i32) {
    %c0_i32 = arith.constant 0 : i32
    %c0_i32_0 = arith.constant 0 : i32
    %c0_i32_1 = arith.constant 0 : i32
    return %c0_i32, %c0_i32_0 : i32, i32
  }
  func.func @transform_9(%arg0: i32) -> (i32, i32) {
    %c0_i32 = arith.constant 0 : i32
    %c0_i32_0 = arith.constant 0 : i32
    %c0_i32_1 = arith.constant 0 : i32
    return %c0_i32, %c0_i32_0 : i32, i32
  }
  func.func @transform_10(%arg0: i32) -> (i32, i32) {
    %c0_i32 = arith.constant 0 : i32
    %c0_i32_0 = arith.constant 0 : i32
    %c0_i32_1 = arith.constant 0 : i32
    return %c0_i32, %c0_i32_0 : i32, i32
  }
  func.func @transform_11(%arg0: i32) -> (i32, i32) {
    %c0_i32 = arith.constant 0 : i32
    %c0_i32_0 = arith.constant 0 : i32
    return %arg0, %c0_i32 : i32, i32
  }
  func.func @transform_12(%arg0: i32) -> (i32, i32) {
    %c0_i32 = arith.constant 0 : i32
    %c0_i32_0 = arith.constant 0 : i32
    return %arg0, %c0_i32 : i32, i32
  }
}

</mosaic_0001>

<llo_original>
// kernel: momentum_smoe_forward.1
$region0: #{momentum_smoe_forward.1}
  #allocation0 [shape = 'u32[]', space=smem, size = 0x4, offset = 0x4, fixed_abs, tag = 'smem constant byte address 0x4 - core index']
  #allocation1 [shape = 'u32[144,128]{1,0:T(1,128)}', space=vmem, size = 0x12000, scoped, tag = 'internal scratch']
  %s0 = inlined_call_operand.vmem [shape: f32[16,32], index: 0, kind: input, shape index: {}]
  %s1 = inlined_call_operand.vmem [shape: f32[16,32], index: 1, kind: input, shape index: {}]
  %s2 = inlined_call_operand.vmem [shape: f32[32,4], index: 2, kind: input, shape index: {}]
  %s3 = inlined_call_operand.vmem [shape: f32[1,4], index: 3, kind: input, shape index: {}]
  %s4 = inlined_call_operand.vmem [shape: bf16[32,256], index: 4, kind: input, shape index: {}]
  %s5 = inlined_call_operand.vmem [shape: f32[1,256], index: 5, kind: input, shape index: {}]
  %s6 = inlined_call_operand.vmem [shape: bf16[256,32], index: 6, kind: input, shape index: {}]
  %s7 = inlined_call_operand.vmem [shape: f32[4,32], index: 7, kind: input, shape index: {}]
  %s8 = inlined_call_operand.vmem [shape: f32[4,256], index: 8, kind: input, shape index: {}]
  %s9 = inlined_call_operand.vmem [shape: f32[1,32], index: 9, kind: input, shape index: {}]
  %s10 = inlined_call_operand.vmem [shape: f32[1,32], index: 10, kind: input, shape index: {}]
  %s11 = inlined_call_operand.hbm [shape: f32[16,32], index: 11, kind: output, shape index: {0}]
  %s12 = inlined_call_operand.hbm [shape: f32[16,32], index: 12, kind: output, shape index: {1}]
  %13 = xla_tuple %s11, %s12
  %s14 = sld [smem:[#allocation0]]
  $region62: #{momentum_smoe_forward.1} parent=0
    _
  %s16 = ssub.s32 1, %s14
  %s17 = scalar_select 0, %s16, %s14
  $region1: #{momentum_smoe_forward.1} parent=0
    #allocation2 [shape = 'u8[8192]{0}', space=vmem, size = 0x2000, scoped, tag = 'output window, operand 0, single buffered']
    #allocation3 [shape = 's32[1]{0}', space=sflag, size = 0x4, scoped, tag = 'scoped memory for momentum_smoe_forward.1']
    #allocation4 [shape = 'u8[8192]{0}', space=vmem, size = 0x2000, scoped, tag = 'output window, operand 1, single buffered']
    #allocation5 [shape = 's32[1]{0}', space=sflag, size = 0x4, scoped, tag = 'scoped memory for momentum_smoe_forward.1']
    %18 = vsyncpa [#allocation3], 0
    %19 = vsyncpa [#allocation5], 0
    // Predicated region
    $region2: #{momentum_smoe_forward.1} parent=1 // pred_check
      _
    $region3: #{momentum_smoe_forward.1} parent=1 // pred_check_branch
      %21 = sbr.rel (0) target = $region5
    $region4: #{momentum_smoe_forward.1} parent=1 // pred_region
      _
    $region5: #{momentum_smoe_forward.1} parent=1 // pred_fallthru
      _
    // Predicated region
    $region6: #{momentum_smoe_forward.1} parent=1 // pred_check
      _
    $region7: #{momentum_smoe_forward.1} parent=1 // pred_check_branch
      %23 = sbr.rel (0) target = $region9
    $region8: #{momentum_smoe_forward.1} parent=1 // pred_region
      _
    $region9: #{momentum_smoe_forward.1} parent=1 // pred_fallthru
      _
    // Predicated region
    $region10: #{momentum_smoe_forward.1} parent=1 // pred_check
      _
    $region11: #{momentum_smoe_forward.1} parent=1 // pred_check_branch
      %25 = sbr.rel (0) target = $region13
    $region12: #{momentum_smoe_forward.1} parent=1 // pred_region
      _
    $region13: #{momentum_smoe_forward.1} parent=1 // pred_fallthru
      _
    // Predicated region
    $region14: #{momentum_smoe_forward.1} parent=1 // pred_check
      _
    $region15: #{momentum_smoe_forward.1} parent=1 // pred_check_branch
      %27 = sbr.rel (0) target = $region17
    $region16: #{momentum_smoe_forward.1} parent=1 // pred_region
      _
    $region17: #{momentum_smoe_forward.1} parent=1 // pred_fallthru
      _
    // Predicated region
    $region18: #{momentum_smoe_forward.1} parent=1 // pred_check
      _
    $region19: #{momentum_smoe_forward.1} parent=1 // pred_check_branch
      %29 = sbr.rel (0) target = $region21
    $region20: #{momentum_smoe_forward.1} parent=1 // pred_region
      _
    $region21: #{momentum_smoe_forward.1} parent=1 // pred_fallthru
      _
    // Predicated region
    $region22: #{momentum_smoe_forward.1} parent=1 // pred_check
      _
    $region23: #{momentum_smoe_forward.1} parent=1 // pred_check_branch
      %31 = sbr.rel (0) target = $region25
    $region24: #{momentum_smoe_forward.1} parent=1 // pred_region
      _
    $region25: #{momentum_smoe_forward.1} parent=1 // pred_fallthru
      _
    // Predicated region
    $region26: #{momentum_smoe_forward.1} parent=1 // pred_check
      _
    $region27: #{momentum_smoe_forward.1} parent=1 // pred_check_branch
      %33 = sbr.rel (0) target = $region29
    $region28: #{momentum_smoe_forward.1} parent=1 // pred_region
      _
    $region29: #{momentum_smoe_forward.1} parent=1 // pred_fallthru
      _
    // Predicated region
    $region30: #{momentum_smoe_forward.1} parent=1 // pred_check
      _
    $region31: #{momentum_smoe_forward.1} parent=1 // pred_check_branch
      %35 = sbr.rel (0) target = $region33
    $region32: #{momentum_smoe_forward.1} parent=1 // pred_region
      _
    $region33: #{momentum_smoe_forward.1} parent=1 // pred_fallthru
      _
    // Predicated region
    $region34: #{momentum_smoe_forward.1} parent=1 // pred_check
      _
    $region35: #{momentum_smoe_forward.1} parent=1 // pred_check_branch
      %37 = sbr.rel (0) target = $region37
    $region36: #{momentum_smoe_forward.1} parent=1 // pred_region
      _
    $region37: #{momentum_smoe_forward.1} parent=1 // pred_fallthru
      _
    // Predicated region
    $region38: #{momentum_smoe_forward.1} parent=1 // pred_check
      _
    $region39: #{momentum_smoe_forward.1} parent=1 // pred_check_branch
      %39 = sbr.rel (0) target = $region41
    $region40: #{momentum_smoe_forward.1} parent=1 // pred_region
      _
    $region41: #{momentum_smoe_forward.1} parent=1 // pred_fallthru
      _
    // Predicated region
    $region42: #{momentum_smoe_forward.1} parent=1 // pred_check
      _
    $region43: #{momentum_smoe_forward.1} parent=1 // pred_check_branch
      %41 = sbr.rel (0) target = $region45
    $region44: #{momentum_smoe_forward.1} parent=1 // pred_region
      _
    $region45: #{momentum_smoe_forward.1} parent=1 // pred_fallthru
      _
    %v43 = vld [vmem:[%s0] sm:$0xff]
    %v44 = vld [vmem:[%s0 + $0x8] sm:$0xff]
    %v45 = vld [vmem:[%s1] sm:$0xff]
    %v46 = vld [vmem:[%s1 + $0x8] sm:$0xff]
    %v47 = vld [vmem:[%s2] sm:$0xff]
    %v48 = vld [vmem:[%s2 + $0x8] sm:$0xff]
    %v49 = vld [vmem:[%s2 + $0x10] sm:$0xff]
    %v50 = vld [vmem:[%s2 + $0x18] sm:$0xff]
    %v51 = vld [vmem:[%s3] sm:$0x1]
    %v53 = vlaneseq
    %v54 = vshrl.u32 %v53, 7
    %v55 = vsub.s32 0, %v54
    %v56 = vrot.slane %v51, %v55
    %vm58 = vcmask 261120
    %v60 = vsel %vm58, %v43, 0
    %v63 = vsel %vm58, %v44, 0
    %65 = vmatprep.subr.mxu0 0.0
    %66 = vmatpush1.msra.mxu0 %v47
    %67 = vmatprep.subr.mxu0 0.0
    %68 = vmatpush1.msra.mxu0 %v48
    %69 = vmatprep.subr.mxu0 0.0
    %70 = vmatpush1.msra.mxu0 %v49
    %71 = vmatprep.subr.mxu0 0.0
    %72 = vmatpush1.msra.mxu0 %v50
    %73 = vmatprep.subr.mxu0 0.0
    %74 = vmatpush1.msra.mxu0 0.0
    %75 = vmatprep.subr.mxu0 0.0
    %76 = vmatpush1.msra.mxu0 0.0
    %77 = vmatprep.subr.mxu0 0.0
    %78 = vmatpush1.msra.mxu0 0.0
    %79 = vmatprep.subr.mxu0 0.0
    %80 = vmatpush1.msra.mxu0 0.0
    %81 = vmatprep.subr.mxu0 0.0
    %82 = vmatpush1.msra.mxu0 0.0
    %83 = vmatprep.subr.mxu0 0.0
    %84 = vmatpush1.msra.mxu0 0.0
    %85 = vmatprep.subr.mxu0 0.0
    %86 = vmatpush1.msra.mxu0 0.0
    %87 = vmatprep.subr.mxu0 0.0
    %88 = vmatpush1.msra.mxu0 0.0
    %89 = vmatprep.subr.mxu0 0.0
    %90 = vmatpush1.msra.mxu0 0.0
    %91 = vmatprep.subr.mxu0 0.0
    %92 = vmatpush1.msra.mxu0 0.0
    %93 = vmatprep.subr.mxu0 0.0
    %94 = vmatpush1.msra.mxu0 0.0
    %95 = vmatprep.subr.mxu0 0.0
    %96 = vmatpush1.msra.mxu0 0.0
    %97 = vmatprep.subr.mxu0 0.0
    %98 = vmatpush1.msra.mxu0 0.0
    %99 = vmatprep.subr.mxu0 0.0
    %100 = vmatpush1.msra.mxu0 0.0
    %101 = vmatprep.subr.mxu0 0.0
    %102 = vmatpush1.msra.mxu0 0.0
    %103 = vmatprep.subr.mxu0 0.0
    %104 = vmatpush1.msra.mxu0 0.0
    %105 = vmatprep.subr.mxu0 0.0
    %106 = vmatpush1.msra.mxu0 0.0
    %107 = vmatprep.subr.mxu0 0.0
    %108 = vmatpush1.msra.mxu0 0.0
    %109 = vmatprep.subr.mxu0 0.0
    %110 = vmatpush1.msra.mxu0 0.0
    %111 = vmatprep.subr.mxu0 0.0
    %112 = vmatpush1.msra.mxu0 0.0
    %113 = vmatprep.subr.mxu0 0.0
    %114 = vmatpush1.msra.mxu0 0.0
    %115 = vmatprep.subr.mxu0 0.0
    %116 = vmatpush1.msra.mxu0 0.0
    %117 = vmatprep.subr.mxu0 0.0
    %118 = vmatpush1.msra.mxu0 0.0
    %119 = vmatprep.subr.mxu0 0.0
    %120 = vmatpush1.msra.mxu0 0.0
    %121 = vmatprep.subr.mxu0 0.0
    %122 = vmatpush1.msra.mxu0 0.0
    %123 = vmatprep.subr.mxu0 0.0
    %124 = vmatpush1.msra.mxu0 0.0
    %125 = vmatprep.subr.mxu0 0.0
    %126 = vmatpush1.msra.mxu0 0.0
    %127 = vmatprep.subr.mxu0 0.0
    %128 = vmatpush1.msra.mxu0 0.0
    %129 = vmatprep.mubr.f32.mxu0 0.0
    %130 = vmatmul.mubr.f32.gmra.mrb[0].mxu0 %v60
    %v131 = vpop.f32.mrb[0].mxu0
    %v132 = vadd.f32 %v56, %v131
    %v133 = vpop.f32.mrb[0].mxu0
    %134 = vmatprep.mubr.f32.mxu0 0.0
    %135 = vmatmul.mubr.f32.gmra.mrb[0].mxu0 %v63
    %v136 = vpop.f32.mrb[0].mxu0
    %v137 = vadd.f32 %v56, %v136
    %v138 = vpop.f32.mrb[0].mxu0
    %139 = vdwg.mxu0
    %v140 = vlaneseq
    %v141 = vand.u32 %v140, 127
    %vm142 = vcmask 31744
    %v143 = vsel %vm142, %v132, -inf
    %144 = vmax.xlane.f32.xlu0 %v143
    %v145 = vpop.xlane.xlu0 %144
    %v146 = vsel %vm142, %v137, -inf
    %147 = vmax.xlane.f32.xlu0 %v146
    %v148 = vpop.xlane.xlu0 %147
    %vm149 = vcmp.eq.f32.partialorder %v132, %v145
    %vm150 = vcmp.eq.f32.partialorder %v137, %v148
    %v151 = vsel %vm149, %v141, 4
    %v152 = vsel %vm150, %v141, 4
    %v153 = vsel %vm142, %v151, 2147483647
    %v154 = vand.u32 %v153, 65535
    %v155 = vshra.s32 %v153, 16
    %v156 = vcvt.s32.f32 %v154
    %v157 = vcvt.s32.f32 %v155
    %158 = vmin.xlane.f32.xlu0 %v157
    %v159 = vpop.xlane.xlu0 %158
    %vm160 = vcmp.eq.f32.partialorder %v157, %v159
    %v161 = vsel %vm160, %v156, inf
    %162 = vmin.xlane.f32.xlu0 %v161
    %v163 = vpop.xlane.xlu0 %162
    %v164 = vcvt.f32.s32 %v163
    %v165 = vcvt.f32.s32 %v159
    %v166 = vshll.u32 %v165, 16
    %v167 = vadd.s32 %v166, %v164
    %v168 = vsel %vm142, %v152, 2147483647
    %v169 = vand.u32 %v168, 65535
    %v170 = vshra.s32 %v168, 16
    %v171 = vcvt.s32.f32 %v169
    %v172 = vcvt.s32.f32 %v170
    %173 = vmin.xlane.f32.xlu0 %v172
    %v174 = vpop.xlane.xlu0 %173
    %vm175 = vcmp.eq.f32.partialorder %v172, %v174
    %v176 = vsel %vm175, %v171, inf
    %177 = vmin.xlane.f32.xlu0 %v176
    %v178 = vpop.xlane.xlu0 %177
    %v179 = vcvt.f32.s32 %v178
    %v180 = vcvt.f32.s32 %v174
    %v181 = vshll.u32 %v180, 16
    %v182 = vadd.s32 %v181, %v179
    %vm183 = vcmp.eq.s32.totalorder %v141, %v167
    %vm184 = vcmp.eq.s32.totalorder %v141, %v182
    %v185 = vsel %vm183, -1e+30, %v132
    %v186 = vsel %vm184, -1e+30, %v137
    %v187 = vsel %vm142, %v185, -inf
    %188 = vmax.xlane.f32.xlu0 %v187
    %v189 = vpop.xlane.xlu0 %188
    %v190 = vsel %vm142, %v186, -inf
    %191 = vmax.xlane.f32.xlu0 %v190
    %v192 = vpop.xlane.xlu0 %191
    %vm193 = vcmp.eq.f32.partialorder %v185, %v189
    %vm194 = vcmp.eq.f32.partialorder %v186, %v192
    %v195 = vsel %vm193, %v141, 4
    %v196 = vsel %vm194, %v141, 4
    %v197 = vsel %vm142, %v195, 2147483647
    %v198 = vand.u32 %v197, 65535
    %v199 = vshra.s32 %v197, 16
    %v200 = vcvt.s32.f32 %v198
    %v201 = vcvt.s32.f32 %v199
    %202 = vmin.xlane.f32.xlu0 %v201
    %v203 = vpop.xlane.xlu0 %202
    %vm204 = vcmp.eq.f32.partialorder %v201, %v203
    %v205 = vsel %vm204, %v200, inf
    %206 = vmin.xlane.f32.xlu0 %v205
    %v207 = vpop.xlane.xlu0 %206
    %v208 = vcvt.f32.s32 %v207
    %v209 = vcvt.f32.s32 %v203
    %v210 = vshll.u32 %v209, 16
    %v211 = vadd.s32 %v210, %v208
    %v212 = vsel %vm142, %v196, 2147483647
    %v213 = vand.u32 %v212, 65535
    %v214 = vshra.s32 %v212, 16
    %v215 = vcvt.s32.f32 %v213
    %v216 = vcvt.s32.f32 %v214
    %217 = vmin.xlane.f32.xlu0 %v216
    %v218 = vpop.xlane.xlu0 %217
    %vm219 = vcmp.eq.f32.partialorder %v216, %v218
    %v220 = vsel %vm219, %v215, inf
    %221 = vmin.xlane.f32.xlu0 %v220
    %v222 = vpop.xlane.xlu0 %221
    %v223 = vcvt.f32.s32 %v222
    %v224 = vcvt.f32.s32 %v218
    %v225 = vshll.u32 %v224, 16
    %v226 = vadd.s32 %v225, %v223
    %vm227 = vcmp.eq.s32.totalorder %v141, %v211
    %vm228 = vcmp.eq.s32.totalorder %v141, %v226
    %v229 = vsub.f32 %v145, %v145
    %v230 = vsub.f32 %v148, %v148
    %v231 = vmul.f32 %v229, 1.442695
    %v232 = vpow.pop %v231
    %v233 = vmul.f32 %v230, 1.442695
    %v234 = vpow.pop %v233
    %v235 = vsub.f32 %v189, %v145
    %v236 = vsub.f32 %v192, %v148
    %v237 = vmul.f32 %v235, 1.442695
    %v238 = vpow.pop %v237
    %v239 = vmul.f32 %v236, 1.442695
    %v240 = vpow.pop %v239
    %v241 = vadd.f32 %v232, %v238
    %v242 = vadd.f32 %v234, %v240
    %v243 = vrcp.pop %v241
    %v244 = vrcp.pop %v242
    %v245 = vsel %vm183, 1, 0
    %v246 = vsel %vm184, 1, 0
    %v247 = vcvt.s32.f32 %v245
    %v248 = vcvt.s32.f32 %v246
    %v249 = vmul.f32 %v232, %v243
    %v250 = vmul.f32 %v234, %v244
    %v251 = vmul.f32 %v247, %v249
    %v252 = vmul.f32 %v248, %v250
    %v253 = vadd.f32 %v251, 0.0
    %v254 = vadd.f32 %v252, 0.0
    %v255 = vsel %vm227, 1, 0
    %v256 = vsel %vm228, 1, 0
    %v257 = vcvt.s32.f32 %v255
    %v258 = vcvt.s32.f32 %v256
    %v259 = vmul.f32 %v238, %v243
    %v260 = vmul.f32 %v240, %v244
    %v261 = vmul.f32 %v257, %v259
    %v262 = vmul.f32 %v258, %v260
    %v263 = vadd.f32 %v253, %v261
    %v264 = vadd.f32 %v254, %v262
    %v265 = vpack.c.bf16 %v44, %v43
    %v266 = vld [vmem:[%s4] sm:$0xff]
    %v267 = vld [vmem:[%s4 + $0x8] sm:$0xff]
    %v268 = vld [vmem:[%s4 + $0x10] sm:$0xff]
    %v269 = vld [vmem:[%s4 + $0x18] sm:$0xff]
    %v270 = vld [vmem:[%s5] sm:$0x3]
    %v272 = vlaneseq
    %v273 = vshrl.u32 %v272, 7
    %v274 = vsub.s32 0, %v273
    %v275 = vrot.slane %v270, %v274
    %v276 = vlaneseq
    %v277 = vshrl.u32 %v276, 7
    %v278 = vsub.s32 1, %v277
    %v279 = vrot.slane %v270, %v278
    %v286 = vunpack.c.l.b16 %v266
    %v287 = vunpack.c.h.b16 %v266
    %v288 = vunpack.c.l.b16 %v267
    %v289 = vunpack.c.h.b16 %v267
    %v290 = vunpack.c.l.b16 %v268
    %v291 = vunpack.c.h.b16 %v268
    %v292 = vunpack.c.l.b16 %v269
    %v293 = vunpack.c.h.b16 %v269
    %v294 = vpack.c.b16 %v288, %v286
    %v295 = vpack.c.b16 %v289, %v287
    %v296 = vpack.c.b16 %v292, %v290
    %v297 = vpack.c.b16 %v293, %v291
    %v303 = vsel %vm58, %v265, 0
    %305 = vmatprep.subr.bf16.mxu0 %v295
    %306 = vmatpush1.bf16.msra.mxu0 %v294
    %307 = vmatprep.subr.bf16.mxu0 %v297
    %308 = vmatpush1.bf16.msra.mxu0 %v296
    %309 = vmatprep.subr.bf16.mxu0 0
    %310 = vmatpush1.bf16.msra.mxu0 0
    %311 = vmatprep.subr.bf16.mxu0 0
    %312 = vmatpush1.bf16.msra.mxu0 0
    %313 = vmatprep.subr.bf16.mxu0 0
    %314 = vmatpush1.bf16.msra.mxu0 0
    %315 = vmatprep.subr.bf16.mxu0 0
    %316 = vmatpush1.bf16.msra.mxu0 0
    %317 = vmatprep.subr.bf16.mxu0 0
    %318 = vmatpush1.bf16.msra.mxu0 0
    %319 = vmatprep.subr.bf16.mxu0 0
    %320 = vmatpush1.bf16.msra.mxu0 0
    %321 = vmatprep.subr.bf16.mxu0 0
    %322 = vmatpush1.bf16.msra.mxu0 0
    %323 = vmatprep.subr.bf16.mxu0 0
    %324 = vmatpush1.bf16.msra.mxu0 0
    %325 = vmatprep.subr.bf16.mxu0 0
    %326 = vmatpush1.bf16.msra.mxu0 0
    %327 = vmatprep.subr.bf16.mxu0 0
    %328 = vmatpush1.bf16.msra.mxu0 0
    %329 = vmatprep.subr.bf16.mxu0 0
    %330 = vmatpush1.bf16.msra.mxu0 0
    %331 = vmatprep.subr.bf16.mxu0 0
    %332 = vmatpush1.bf16.msra.mxu0 0
    %333 = vmatprep.subr.bf16.mxu0 0
    %334 = vmatpush1.bf16.msra.mxu0 0
    %335 = vmatprep.subr.bf16.mxu0 0
    %336 = vmatpush1.bf16.msra.mxu0 0
    %337 = vmatprep.mubr.bf16.mxu0 0
    %338 = vmatmul.mubr.bf16.gmra.mrb[0].mxu0 %v303
    %v339 = vpop.f32.mrb[0].mxu0
    %v340 = vadd.f32 %v275, %v339
    %v341 = vpop.f32.mrb[0].mxu0
    %v342 = vadd.f32 %v279, %v341
    %v343 = vpop.f32.mrb[0].mxu0
    %v344 = vadd.f32 %v275, %v343
    %v345 = vpop.f32.mrb[0].mxu0
    %v346 = vadd.f32 %v279, %v345
    %347 = vdwg.mxu0
    %v348 = vmax.f32 %v340, 0.0
    %v349 = vmax.f32 %v342, 0.0
    %v350 = vmax.f32 %v344, 0.0
    %v351 = vmax.f32 %v346, 0.0
    %v352 = vld [vmem:[%s8] sm:$0xff]
    %v354 = vcombine.high %v352, %v352
    %v356 = vsel %vm142, %v263, 0
    %v359 = vsel %vm142, %v264, 0
    %vm361 = vcmask 1043456
    %v362 = vsel %vm361, %v352, 0
    %v364 = vsel %vm361, %v354, 0
    %366 = vmatprep.subr.mxu0 %v364
    %367 = vmatpush1.msra.mxu0 %v362
    %368 = vmatprep.subr.mxu0 0.0
    %369 = vmatpush1.msra.mxu0 0.0
    %370 = vmatprep.subr.mxu0 0.0
    %371 = vmatpush1.msra.mxu0 0.0
    %372 = vmatprep.subr.mxu0 0.0
    %373 = vmatpush1.msra.mxu0 0.0
    %374 = vmatprep.subr.mxu0 0.0
    %375 = vmatpush1.msra.mxu0 0.0
    %376 = vmatprep.subr.mxu0 0.0
    %377 = vmatpush1.msra.mxu0 0.0
    %378 = vmatprep.subr.mxu0 0.0
    %379 = vmatpush1.msra.mxu0 0.0
    %380 = vmatprep.subr.mxu0 0.0
    %381 = vmatpush1.msra.mxu0 0.0
    %382 = vmatprep.subr.mxu0 0.0
    %383 = vmatpush1.msra.mxu0 0.0
    %384 = vmatprep.subr.mxu0 0.0
    %385 = vmatpush1.msra.mxu0 0.0
    %386 = vmatprep.subr.mxu0 0.0
    %387 = vmatpush1.msra.mxu0 0.0
    %388 = vmatprep.subr.mxu0 0.0
    %389 = vmatpush1.msra.mxu0 0.0
    %390 = vmatprep.subr.mxu0 0.0
    %391 = vmatpush1.msra.mxu0 0.0
    %392 = vmatprep.subr.mxu0 0.0
    %393 = vmatpush1.msra.mxu0 0.0
    %394 = vmatprep.subr.mxu0 0.0
    %395 = vmatpush1.msra.mxu0 0.0
    %396 = vmatprep.subr.mxu0 0.0
    %397 = vmatpush1.msra.mxu0 0.0
    %398 = vmatprep.subr.mxu0 0.0
    %399 = vmatpush1.msra.mxu0 0.0
    %400 = vmatprep.subr.mxu0 0.0
    %401 = vmatpush1.msra.mxu0 0.0
    %402 = vmatprep.subr.mxu0 0.0
    %403 = vmatpush1.msra.mxu0 0.0
    %404 = vmatprep.subr.mxu0 0.0
    %405 = vmatpush1.msra.mxu0 0.0
    %406 = vmatprep.subr.mxu0 0.0
    %407 = vmatpush1.msra.mxu0 0.0
    %408 = vmatprep.subr.mxu0 0.0
    %409 = vmatpush1.msra.mxu0 0.0
    %410 = vmatprep.subr.mxu0 0.0
    %411 = vmatpush1.msra.mxu0 0.0
    %412 = vmatprep.subr.mxu0 0.0
    %413 = vmatpush1.msra.mxu0 0.0
    %414 = vmatprep.subr.mxu0 0.0
    %415 = vmatpush1.msra.mxu0 0.0
    %416 = vmatprep.subr.mxu0 0.0
    %417 = vmatpush1.msra.mxu0 0.0
    %418 = vmatprep.subr.mxu0 0.0
    %419 = vmatpush1.msra.mxu0 0.0
    %420 = vmatprep.subr.mxu0 0.0
    %421 = vmatpush1.msra.mxu0 0.0
    %422 = vmatprep.subr.mxu0 0.0
    %423 = vmatpush1.msra.mxu0 0.0
    %424 = vmatprep.subr.mxu0 0.0
    %425 = vmatpush1.msra.mxu0 0.0
    %426 = vmatprep.subr.mxu0 0.0
    %427 = vmatpush1.msra.mxu0 0.0
    %428 = vmatprep.subr.mxu0 0.0
    %429 = vmatpush1.msra.mxu0 0.0
    %430 = vmatprep.mubr.f32.mxu0 0.0
    %431 = vmatmul.mubr.f32.gmra.mrb[0].mxu0 %v356
    %v432 = vpop.f32.mrb[0].mxu0
    %v433 = vadd.f32 0.0, %v432
    %v434 = vpop.f32.mrb[0].mxu0
    %v435 = vadd.f32 0.0, %v434
    %436 = vmatprep.mubr.f32.mxu0 0.0
    %437 = vmatmul.mubr.f32.gmra.mrb[0].mxu0 %v359
    %v438 = vpop.f32.mrb[0].mxu0
    %v439 = vadd.f32 0.0, %v438
    %v440 = vpop.f32.mrb[0].mxu0
    %v441 = vadd.f32 0.0, %v440
    %442 = vdwg.mxu0
    %v443 = vmul.f32 %v348, %v433
    %v444 = vmul.f32 %v349, %v435
    %v445 = vmul.f32 %v350, %v439
    %v446 = vmul.f32 %v351, %v441
    %v447 = vpack.c.bf16 %v445, %v443
    %v448 = vpack.c.bf16 %v446, %v444
    %v449 = vld [vmem:[%s6] sm:$0xf]
    %v450 = vld [vmem:[%s6 + $0x4] sm:$0xf]
    %v451 = vld [vmem:[%s6 + $0x8] sm:$0xf]
    %v452 = vld [vmem:[%s6 + $0xc] sm:$0xf]
    %v453 = vld [vmem:[%s6 + $0x10] sm:$0xf]
    %v454 = vld [vmem:[%s6 + $0x14] sm:$0xf]
    %v455 = vld [vmem:[%s6 + $0x18] sm:$0xf]
    %v456 = vld [vmem:[%s6 + $0x1c] sm:$0xf]
    %v457 = vld [vmem:[%s6 + $0x20] sm:$0xf]
    %v458 = vld [vmem:[%s6 + $0x24] sm:$0xf]
    %v459 = vld [vmem:[%s6 + $0x28] sm:$0xf]
    %v460 = vld [vmem:[%s6 + $0x2c] sm:$0xf]
    %v461 = vld [vmem:[%s6 + $0x30] sm:$0xf]
    %v462 = vld [vmem:[%s6 + $0x34] sm:$0xf]
    %v463 = vld [vmem:[%s6 + $0x38] sm:$0xf]
    %v464 = vld [vmem:[%s6 + $0x3c] sm:$0xf]
    %v465 = vld [vmem:[%s6 + $0x40] sm:$0xf]
    %v466 = vld [vmem:[%s6 + $0x44] sm:$0xf]
    %v467 = vld [vmem:[%s6 + $0x48] sm:$0xf]
    %v468 = vld [vmem:[%s6 + $0x4c] sm:$0xf]
    %v469 = vld [vmem:[%s6 + $0x50] sm:$0xf]
    %v470 = vld [vmem:[%s6 + $0x54] sm:$0xf]
    %v471 = vld [vmem:[%s6 + $0x58] sm:$0xf]
    %v472 = vld [vmem:[%s6 + $0x5c] sm:$0xf]
    %v473 = vld [vmem:[%s6 + $0x60] sm:$0xf]
    %v474 = vld [vmem:[%s6 + $0x64] sm:$0xf]
    %v475 = vld [vmem:[%s6 + $0x68] sm:$0xf]
    %v476 = vld [vmem:[%s6 + $0x6c] sm:$0xf]
    %v477 = vld [vmem:[%s6 + $0x70] sm:$0xf]
    %v478 = vld [vmem:[%s6 + $0x74] sm:$0xf]
    %v479 = vld [vmem:[%s6 + $0x78] sm:$0xf]
    %v480 = vld [vmem:[%s6 + $0x7c] sm:$0xf]
    %v481 = vld [vmem:[%s7] sm:$0xf]
    %v483 = vsel %vm361, %v481, 0
    %485 = vmatprep.subr.mxu0 0.0
    %486 = vmatpush1.msra.mxu0 %v483
    %487 = vmatprep.subr.mxu0 0.0
    %488 = vmatpush1.msra.mxu0 0.0
    %489 = vmatprep.subr.mxu0 0.0
    %490 = vmatpush1.msra.mxu0 0.0
    %491 = vmatprep.subr.mxu0 0.0
    %492 = vmatpush1.msra.mxu0 0.0
    %493 = vmatprep.subr.mxu0 0.0
    %494 = vmatpush1.msra.mxu0 0.0
    %495 = vmatprep.subr.mxu0 0.0
    %496 = vmatpush1.msra.mxu0 0.0
    %497 = vmatprep.subr.mxu0 0.0
    %498 = vmatpush1.msra.mxu0 0.0
    %499 = vmatprep.subr.mxu0 0.0
    %500 = vmatpush1.msra.mxu0 0.0
    %501 = vmatprep.subr.mxu0 0.0
    %502 = vmatpush1.msra.mxu0 0.0
    %503 = vmatprep.subr.mxu0 0.0
    %504 = vmatpush1.msra.mxu0 0.0
    %505 = vmatprep.subr.mxu0 0.0
    %506 = vmatpush1.msra.mxu0 0.0
    %507 = vmatprep.subr.mxu0 0.0
    %508 = vmatpush1.msra.mxu0 0.0
    %509 = vmatprep.subr.mxu0 0.0
    %510 = vmatpush1.msra.mxu0 0.0
    %511 = vmatprep.subr.mxu0 0.0
    %512 = vmatpush1.msra.mxu0 0.0
    %513 = vmatprep.subr.mxu0 0.0
    %514 = vmatpush1.msra.mxu0 0.0
    %515 = vmatprep.subr.mxu0 0.0
    %516 = vmatpush1.msra.mxu0 0.0
    %517 = vmatprep.subr.mxu0 0.0
    %518 = vmatpush1.msra.mxu0 0.0
    %519 = vmatprep.subr.mxu0 0.0
    %520 = vmatpush1.msra.mxu0 0.0
    %521 = vmatprep.subr.mxu0 0.0
    %522 = vmatpush1.msra.mxu0 0.0
    %523 = vmatprep.subr.mxu0 0.0
    %524 = vmatpush1.msra.mxu0 0.0
    %525 = vmatprep.subr.mxu0 0.0
    %526 = vmatpush1.msra.mxu0 0.0
    %527 = vmatprep.subr.mxu0 0.0
    %528 = vmatpush1.msra.mxu0 0.0
    %529 = vmatprep.subr.mxu0 0.0
    %530 = vmatpush1.msra.mxu0 0.0
    %531 = vmatprep.subr.mxu0 0.0
    %532 = vmatpush1.msra.mxu0 0.0
    %533 = vmatprep.subr.mxu0 0.0
    %534 = vmatpush1.msra.mxu0 0.0
    %535 = vmatprep.subr.mxu0 0.0
    %536 = vmatpush1.msra.mxu0 0.0
    %537 = vmatprep.subr.mxu0 0.0
    %538 = vmatpush1.msra.mxu0 0.0
    %539 = vmatprep.subr.mxu0 0.0
    %540 = vmatpush1.msra.mxu0 0.0
    %541 = vmatprep.subr.mxu0 0.0
    %542 = vmatpush1.msra.mxu0 0.0
    %543 = vmatprep.subr.mxu0 0.0
    %544 = vmatpush1.msra.mxu0 0.0
    %545 = vmatprep.subr.mxu0 0.0
    %546 = vmatpush1.msra.mxu0 0.0
    %547 = vmatprep.subr.mxu0 0.0
    %548 = vmatpush1.msra.mxu0 0.0
    %549 = vmatprep.mubr.f32.mxu0 0.0
    %550 = vmatmul.mubr.f32.gmra.mrb[0].mxu0 %v356
    %v551 = vpop.f32.mrb[0].mxu0
    %v552 = vadd.f32 0.0, %v551
    %v553 = vpop.f32.mrb[0].mxu0
    %554 = vmatprep.mubr.f32.mxu0 0.0
    %555 = vmatmul.mubr.f32.gmra.mrb[0].mxu0 %v359
    %v556 = vpop.f32.mrb[0].mxu0
    %v557 = vadd.f32 0.0, %v556
    %v558 = vpop.f32.mrb[0].mxu0
    %559 = vdwg.mxu0
    %v592 = vunpack.c.l.b16 %v449
    %v593 = vunpack.c.l.b16 %v450
    %v594 = vunpack.c.l.b16 %v451
    %v595 = vunpack.c.l.b16 %v452
    %v596 = vunpack.c.l.b16 %v453
    %v597 = vunpack.c.l.b16 %v454
    %v598 = vunpack.c.l.b16 %v455
    %v599 = vunpack.c.l.b16 %v456
    %v600 = vunpack.c.l.b16 %v457
    %v601 = vunpack.c.l.b16 %v458
    %v602 = vunpack.c.l.b16 %v459
    %v603 = vunpack.c.l.b16 %v460
    %v604 = vunpack.c.l.b16 %v461
    %v605 = vunpack.c.l.b16 %v462
    %v606 = vunpack.c.l.b16 %v463
    %v607 = vunpack.c.l.b16 %v464
    %v608 = vunpack.c.l.b16 %v465
    %v609 = vunpack.c.l.b16 %v466
    %v610 = vunpack.c.l.b16 %v467
    %v611 = vunpack.c.l.b16 %v468
    %v612 = vunpack.c.l.b16 %v469
    %v613 = vunpack.c.l.b16 %v470
    %v614 = vunpack.c.l.b16 %v471
    %v615 = vunpack.c.l.b16 %v472
    %v616 = vunpack.c.l.b16 %v473
    %v617 = vunpack.c.l.b16 %v474
    %v618 = vunpack.c.l.b16 %v475
    %v619 = vunpack.c.l.b16 %v476
    %v620 = vunpack.c.l.b16 %v477
    %v621 = vunpack.c.l.b16 %v478
    %v622 = vunpack.c.l.b16 %v479
    %v623 = vunpack.c.l.b16 %v480
    %v624 = vpack.c.b16 %v593, %v592
    %v625 = vpack.c.b16 %v595, %v594
    %v626 = vpack.c.b16 %v597, %v596
    %v627 = vpack.c.b16 %v599, %v598
    %v628 = vpack.c.b16 %v601, %v600
    %v629 = vpack.c.b16 %v603, %v602
    %v630 = vpack.c.b16 %v605, %v604
    %v631 = vpack.c.b16 %v607, %v606
    %v632 = vpack.c.b16 %v609, %v608
    %v633 = vpack.c.b16 %v611, %v610
    %v634 = vpack.c.b16 %v613, %v612
    %v635 = vpack.c.b16 %v615, %v614
    %v636 = vpack.c.b16 %v617, %v616
    %v637 = vpack.c.b16 %v619, %v618
    %v638 = vpack.c.b16 %v621, %v620
    %v639 = vpack.c.b16 %v623, %v622
    %656 = vmatprep.subr.bf16.mxu0 0
    %657 = vmatpush1.bf16.msra.mxu0 %v624
    %658 = vmatprep.subr.bf16.mxu0 0
    %659 = vmatpush1.bf16.msra.mxu0 %v625
    %660 = vmatprep.subr.bf16.mxu0 0
    %661 = vmatpush1.bf16.msra.mxu0 %v626
    %662 = vmatprep.subr.bf16.mxu0 0
    %663 = vmatpush1.bf16.msra.mxu0 %v627
    %664 = vmatprep.subr.bf16.mxu0 0
    %665 = vmatpush1.bf16.msra.mxu0 %v628
    %666 = vmatprep.subr.bf16.mxu0 0
    %667 = vmatpush1.bf16.msra.mxu0 %v629
    %668 = vmatprep.subr.bf16.mxu0 0
    %669 = vmatpush1.bf16.msra.mxu0 %v630
    %670 = vmatprep.subr.bf16.mxu0 0
    %671 = vmatpush1.bf16.msra.mxu0 %v631
    %672 = vmatprep.subr.bf16.mxu0 0
    %673 = vmatpush1.bf16.msra.mxu0 %v632
    %674 = vmatprep.subr.bf16.mxu0 0
    %675 = vmatpush1.bf16.msra.mxu0 %v633
    %676 = vmatprep.subr.bf16.mxu0 0
    %677 = vmatpush1.bf16.msra.mxu0 %v634
    %678 = vmatprep.subr.bf16.mxu0 0
    %679 = vmatpush1.bf16.msra.mxu0 %v635
    %680 = vmatprep.subr.bf16.mxu0 0
    %681 = vmatpush1.bf16.msra.mxu0 %v636
    %682 = vmatprep.subr.bf16.mxu0 0
    %683 = vmatpush1.bf16.msra.mxu0 %v637
    %684 = vmatprep.subr.bf16.mxu0 0
    %685 = vmatpush1.bf16.msra.mxu0 %v638
    %686 = vmatprep.subr.bf16.mxu0 0
    %687 = vmatpush1.bf16.msra.mxu0 %v639
    %688 = vmatprep.mubr.bf16.mxu0 %v448
    %689 = vmatmul.mubr.bf16.gmra.mrb[0].mxu0 %v447
    %v690 = vpop.f32.mrb[0].mxu0
    %v691 = vadd.f32 %v552, %v690
    %v692 = vpop.f32.mrb[0].mxu0
    %v693 = vpop.f32.mrb[0].mxu0
    %v694 = vadd.f32 %v557, %v693
    %v695 = vpop.f32.mrb[0].mxu0
    %696 = vdwg.mxu0
    %v697 = vmul.f32 %v45, 0.7
    %v698 = vmul.f32 %v46, 0.7
    %v699 = vsub.f32 %v697, %v691
    %v700 = vsub.f32 %v698, %v694
    %v701 = vadd.f32 %v43, %v699
    %v702 = vadd.f32 %v44, %v700
    %v703 = vsel %vm58, %v701, 0.0
    %704 = vadd.xlane.f32.xlu0 %v703
    %v705 = vpop.xlane.xlu0 %704
    %v706 = vsel %vm58, %v702, 0.0
    %707 = vadd.xlane.f32.xlu0 %v706
    %v708 = vpop.xlane.xlu0 %707
    %v709 = vrcp.pop 32.0
    %v710 = vmul.f32 %v705, %v709
    %v711 = vmul.f32 %v708, %v709
    %v712 = vsub.f32 %v701, %v710
    %v713 = vsub.f32 %v702, %v711
    %v714 = vmul.f32 %v712, %v712
    %v715 = vmul.f32 %v713, %v713
    %v716 = vsel %vm58, %v714, 0.0
    %717 = vadd.xlane.f32.xlu0 %v716
    %v718 = vpop.xlane.xlu0 %717
    %v719 = vsel %vm58, %v715, 0.0
    %720 = vadd.xlane.f32.xlu0 %v719
    %v721 = vpop.xlane.xlu0 %720
    %v722 = vmul.f32 %v718, %v709
    %v723 = vmul.f32 %v721, %v709
    %v724 = vadd.f32 %v722, 1e-05
    %v725 = vadd.f32 %v723, 1e-05
    %v726 = vrsqrt.pop %v724
    %v727 = vrsqrt.pop %v725
    %v728 = vmul.f32 %v712, %v726
    %v729 = vmul.f32 %v713, %v727
    %v730 = vld [vmem:[%s9] sm:$0x1]
    %v732 = vlaneseq
    %v733 = vshrl.u32 %v732, 7
    %v734 = vsub.s32 0, %v733
    %v735 = vrot.slane %v730, %v734
    %v737 = vmul.f32 %v728, %v735
    %v738 = vmul.f32 %v729, %v735
    %v739 = vld [vmem:[%s10] sm:$0x1]
    %v741 = vlaneseq
    %v742 = vshrl.u32 %v741, 7
    %v743 = vsub.s32 0, %v742
    %v744 = vrot.slane %v739, %v743
    %v746 = vadd.f32 %v737, %v744
    %v747 = vadd.f32 %v738, %v744
    %748 = vst.msk [vmem:[#allocation2] sm:$0xff] %vm58, %v746
    %749 = vst.msk [vmem:[#allocation2 + $0x8] sm:$0xff] %vm58, %v747
    %750 = vst.msk [vmem:[#allocation4] sm:$0xff] %vm58, %v699
    %751 = vst.msk [vmem:[#allocation4 + $0x8] sm:$0xff] %vm58, %v700
    // Predicated region
    $region46: #{momentum_smoe_forward.1} parent=1 // pred_check
      _
    $region47: #{momentum_smoe_forward.1} parent=1 // pred_check_branch
      %753 = sbr.rel (0) target = $region49
    $region48: #{momentum_smoe_forward.1} parent=1 // pred_region
      %s755 = ssub.s32 256, 256
      %756 = vsyncadd [#allocation3], %s755
      %s757 = sshll.u32 [#allocation2], 4
      %s758 = int_to_ptr.vmem [resolvable:$true] %s757
      %763 = dma.vmem_to_hbm [thread:$0]  %s758, 256, %s11, [#allocation3], 128, 128, 8
    $region49: #{momentum_smoe_forward.1} parent=1 // pred_fallthru
      _
    // Predicated region
    $region50: #{momentum_smoe_forward.1} parent=1 // pred_check
      _
    $region51: #{momentum_smoe_forward.1} parent=1 // pred_check_branch
      %765 = sbr.rel (0) target = $region53
    $region52: #{momentum_smoe_forward.1} parent=1 // pred_region
      %s767 = ssub.s32 256, 256
      %768 = vsyncadd [#allocation5], %s767
      %s769 = sshll.u32 [#allocation4], 4
      %s770 = int_to_ptr.vmem [resolvable:$true] %s769
      %775 = dma.vmem_to_hbm [thread:$0]  %s770, 256, %s12, [#allocation5], 128, 128, 8
    $region53: #{momentum_smoe_forward.1} parent=1 // pred_fallthru
      _
    // Predicated region
    $region54: #{momentum_smoe_forward.1} parent=1 // pred_check
      _
    $region55: #{momentum_smoe_forward.1} parent=1 // pred_check_branch
      %777 = sbr.rel (0) target = $region57
    $region56: #{momentum_smoe_forward.1} parent=1 // pred_region
      %778 = dma.done [#allocation3], 256
    $region57: #{momentum_smoe_forward.1} parent=1 // pred_fallthru
      _
    // Predicated region
    $region58: #{momentum_smoe_forward.1} parent=1 // pred_check
      _
    $region59: #{momentum_smoe_forward.1} parent=1 // pred_check_branch
      %780 = sbr.rel (0) target = $region61
    $region60: #{momentum_smoe_forward.1} parent=1 // pred_region
      %781 = dma.done [#allocation5], 256
    $region61: #{momentum_smoe_forward.1} parent=1 // pred_fallthru
      _
    %782 = vsyncpa [#allocation3], 1
    %783 = vsyncpa [#allocation5], 1

</llo_original>
